<compile_context>
chip_gen: v7x
topology: tpu7x:2x2x1
jax: 0.10.0
libtpu: 0.0.40
codegen_flags: <defaults>
</compile_context>

<pallas_src>
import jax
import jax.numpy as jnp
import numpy as np
from jax.experimental import pallas as pl
from jax.experimental.pallas import tpu as pltpu

# ---- "config" (small synthetic sizes consistent with the module) ----
B = 2            # batch
S = 8            # sequence length
HIDDEN = 32      # __C.HIDDEN_SIZE
FLAT_MLP = 64    # __C.FLAT_MLP_SIZE
GLIMPSES = 2     # __C.FLAT_GLIMPSES
FLAT_OUT = 64    # __C.FLAT_OUT_SIZE

# lane/sublane-friendly padded widths (zero-padded once in prepare_params)
MID_PAD = 128    # FLAT_MLP  -> full 128-lane N for the first GEMM
G_PAD = 8        # glimpse axis -> sublane-friendly N for the second GEMM
OUT_PAD = 128    # FLAT_OUT  -> lane-dense (unmasked) output store


def attflat_kernel(x_ref, bias_ref, w1_ref, b1_ref, w2_ref, wm_ref, bm_ref, out_ref):
    # Whole problem in one (gridless) invocation.
    x3 = x_ref[...]                                    # (B, S, HIDDEN) f32
    x2 = x3.reshape(B * S, HIDDEN)                     # sublane-aligned merge -> layout no-op

    # --- MLP: Linear -> ReLU -> (dropout = identity) -> Linear, batched GEMMs ---
    h = jnp.dot(x2, w1_ref[...], preferred_element_type=jnp.float32) + b1_ref[...]
    h = jnp.maximum(h, 0.0)                            # (B*S, MID_PAD)
    # b2 and the -1e9 mask bias are pre-folded into bias_ref (one add total).
    att = jnp.dot(h, w2_ref[...], preferred_element_type=jnp.float32) + bias_ref[...]

    # --- softmax over the sequence axis, per batch & glimpse ---
    att3 = att.reshape(B, S, G_PAD)                    # sublane-aligned split -> layout no-op
    m = jnp.max(att3, axis=1, keepdims=True)           # (B, 1, G_PAD)
    e = jnp.exp(att3 - m)
    denom = jnp.sum(e, axis=1, keepdims=True)
    r = pl.reciprocal(denom, approx=True)              # EUP vrcp (free slot)
    r = r * (2.0 - denom * r)                          # one Newton step -> ~f32 accuracy
    att3 = e * r                                       # (B, S, G_PAD)

    # --- attention pooling + per-glimpse merge GEMMs (no glimpse lane-concat) ---
    # pooled_g[b, :] = sum_s att3[b, s, g] * x[b, s, :];   out = sum_g pooled_g @ wm_g + bm
    out = bm_ref[...]                                  # (1, OUT_PAD), broadcasts over B
    for g in range(GLIMPSES):
        pooled = jnp.sum(att3[:, :, g:g + 1] * x3, axis=1)           # (B, HIDDEN)
        out = out + jnp.dot(pooled, wm_ref[g], preferred_element_type=jnp.float32)
    out_ref[...] = out.astype(out_ref.dtype)           # (B, OUT_PAD), unmasked 128-lane store


def prepare_params(params):
    """One-time (per-model) padding/splitting of weights -- hoisted out of the per-call path."""
    w1, b1, w2, b2, wm, bm = params
    w1p = jnp.zeros((HIDDEN, MID_PAD), jnp.float32).at[:, :FLAT_MLP].set(w1)
    b1p = jnp.zeros((1, MID_PAD), jnp.float32).at[:, :FLAT_MLP].set(b1)
    w2p = jnp.zeros((MID_PAD, G_PAD), jnp.float32).at[:FLAT_MLP, :GLIMPSES].set(w2)
    b2p = jnp.zeros((1, G_PAD), jnp.float32).at[:, :GLIMPSES].set(b2)   # folded into mask bias
    # linear_merge weight pre-split into per-glimpse slabs (glimpse-major concat order).
    wm3 = wm.reshape(GLIMPSES, HIDDEN, FLAT_OUT)
    wmp = jnp.zeros((GLIMPSES, HIDDEN, OUT_PAD), jnp.float32).at[:, :, :FLAT_OUT].set(wm3)
    bmp = jnp.zeros((1, OUT_PAD), jnp.float32).at[:, :FLAT_OUT].set(bm)
    return tuple(jax.device_put(p) for p in (w1p, b1p, w2p, b2p, wmp, bmp))


@jax.jit
def attflat(x, x_mask_bool, prepared):
    """x: (B, S, HIDDEN) f32;  x_mask_bool: (B, 1, 1, S) bool (True = padded position)."""
    w1p, b1p, w2p, b2p, wmp, bmp = prepared

    # Per-call only: additive -1e9 mask bias with b2 folded in, broadcast over the
    # (padded) glimpse axis.  (mask.squeeze(1).squeeze(1).unsqueeze(2) in the reference.)
    mask_f = x_mask_bool.reshape(B, S, 1).astype(jnp.float32)
    bias2d = (mask_f * -1.0e9 + b2p).reshape(B * S, G_PAD)

    vmem = pl.BlockSpec(memory_space=pltpu.MemorySpace.VMEM)   # whole array, VMEM-resident
    out = pl.pallas_call(
        attflat_kernel,
        out_shape=jax.ShapeDtypeStruct((B, OUT_PAD), jnp.float32),
        in_specs=[vmem] * 7,
        out_specs=vmem,
    )(x, bias2d, w1p, b1p, w2p, wmp, bmp)
    # TODO(synk): at production B/S, add a "parallel" batch-tile grid axis (v7x 2-TC)
    # and grow per-step GEMM M toward the MXU width; unnecessary at these toy shapes.
    return out[:, :FLAT_OUT]                             # slice the lane padding away


def init_params(key):
    """Deterministic nn.Linear-style init: U(-1/sqrt(fan_in), 1/sqrt(fan_in))."""
    ks = jax.random.split(key, 6)

    def lin(kw, kb, fan_in, fan_out):
        bound = 1.0 / np.sqrt(fan_in)
        w = jax.random.uniform(kw, (fan_in, fan_out), jnp.float32, -bound, bound)
        b = jax.random.uniform(kb, (1, fan_out), jnp.float32, -bound, bound)
        return w, b

    w1, b1 = lin(ks[0], ks[1], HIDDEN, FLAT_MLP)
    w2, b2 = lin(ks[2], ks[3], FLAT_MLP, GLIMPSES)
    wm, bm = lin(ks[4], ks[5], HIDDEN * GLIMPSES, FLAT_OUT)
    return (w1, b1, w2, b2, wm, bm)


def attflat_ref(x, x_mask_bool, params):
    """Pure-JAX reference mirroring the PyTorch forward (masked_fill + exact softmax)."""
    w1, b1, w2, b2, wm, bm = params
    att = jnp.maximum(x @ w1 + b1, 0.0) @ w2 + b2             # (B, S, G)
    mask = x_mask_bool.reshape(B, S, 1)
    att = jnp.where(mask, -1.0e9, att)
    att = jax.nn.softmax(att, axis=1)
    pooled = jnp.einsum("bsg,bsh->bgh", att, x)               # (B, G, H)
    x_atted = pooled.reshape(B, GLIMPSES * HIDDEN)            # glimpse-major concat
    return x_atted @ wm + bm


if __name__ == "__main__":
    key = jax.random.PRNGKey(0)
    k_x, k_p = jax.random.split(key)

    x = jax.random.normal(k_x, (B, S, HIDDEN), jnp.float32)
    # valid lengths per batch element; True = padded position
    lengths = jnp.array([S, 5], dtype=jnp.int32)
    x_mask = (jnp.arange(S)[None, :] >= lengths[:, None]).reshape(B, 1, 1, S)

    params = init_params(k_p)
    prepared = prepare_params(params)     # one-time padding, hoisted out of the call path

    out = attflat(x, x_mask, prepared)
    out = jax.block_until_ready(out)

    ref = attflat_ref(x, x_mask, params)
    # Note: additive -1e9 bias (vs masked_fill) and the approx-reciprocal + Newton
    # normalizer both stay well inside this tolerance for realistic logit magnitudes.
    np.testing.assert_allclose(np.asarray(out), np.asarray(ref), rtol=1e-4, atol=1e-4)

    print("KERNEL_OK")
</pallas_src>

<mosaic_0001>
module attributes {stable_mosaic.version = 11 : i64} {
  func.func @attflat_kernel(%arg0: memref<2x8x32xf32, #tpu.memory_space<vmem>>, %arg1: memref<16x8xf32, #tpu.memory_space<vmem>>, %arg2: memref<32x128xf32, #tpu.memory_space<vmem>>, %arg3: memref<1x128xf32, #tpu.memory_space<vmem>>, %arg4: memref<128x8xf32, #tpu.memory_space<vmem>>, %arg5: memref<2x32x128xf32, #tpu.memory_space<vmem>>, %arg6: memref<1x128xf32, #tpu.memory_space<vmem>>, %arg7: memref<2x128xf32, #tpu.memory_space<vmem>>) attributes {dimension_semantics = [], scalar_prefetch = 0 : i64, scratch_operands = 0 : i64, tpu.core_type = #tpu.core_type<tc>} {
    %c0 = arith.constant 0 : index
    %c0_0 = arith.constant 0 : index
    %c0_1 = arith.constant 0 : index
    %0 = vector.load %arg0[%c0, %c0_0, %c0_1] : memref<2x8x32xf32, #tpu.memory_space<vmem>>, vector<2x8x32xf32>
    %1 = vector.shape_cast %0 : vector<2x8x32xf32> to vector<16x32xf32>
    %c0_2 = arith.constant 0 : index
    %c0_3 = arith.constant 0 : index
    %2 = vector.load %arg2[%c0_2, %c0_3] : memref<32x128xf32, #tpu.memory_space<vmem>>, vector<32x128xf32>
    %cst = arith.constant dense<0.000000e+00> : vector<16x128xf32>
    %3 = tpu.matmul %1, %2, %cst {dimension_numbers = #tpu.dot_dimension_numbers<[1], [0], [0], [1], [0, 0, 1, 1], [], []>} : vector<16x32xf32>, vector<32x128xf32>, vector<16x128xf32> -> vector<16x128xf32>
    %c0_4 = arith.constant 0 : index
    %c0_5 = arith.constant 0 : index
    %4 = vector.load %arg3[%c0_4, %c0_5] : memref<1x128xf32, #tpu.memory_space<vmem>>, vector<1x128xf32>
    %5 = vector.broadcast %4 : vector<1x128xf32> to vector<16x128xf32>
    %6 = arith.addf %3, %5 : vector<16x128xf32>
    %cst_6 = arith.constant 0.000000e+00 : f32
    %7 = vector.broadcast %cst_6 : f32 to vector<16x128xf32>
    %8 = arith.maximumf %6, %7 : vector<16x128xf32>
    %c0_7 = arith.constant 0 : index
    %c0_8 = arith.constant 0 : index
    %9 = vector.load %arg4[%c0_7, %c0_8] : memref<128x8xf32, #tpu.memory_space<vmem>>, vector<128x8xf32>
    %cst_9 = arith.constant dense<0.000000e+00> : vector<16x8xf32>
    %10 = tpu.matmul %8, %9, %cst_9 {dimension_numbers = #tpu.dot_dimension_numbers<[1], [0], [0], [1], [0, 0, 1, 1], [], []>} : vector<16x128xf32>, vector<128x8xf32>, vector<16x8xf32> -> vector<16x8xf32>
    %c0_10 = arith.constant 0 : index
    %c0_11 = arith.constant 0 : index
    %11 = vector.load %arg1[%c0_10, %c0_11] : memref<16x8xf32, #tpu.memory_space<vmem>>, vector<16x8xf32>
    %12 = arith.addf %10, %11 : vector<16x8xf32>
    %13 = vector.shape_cast %12 : vector<16x8xf32> to vector<2x8x8xf32>
    %cst_12 = arith.constant dense<0xFF800000> : vector<2x8xf32>
    %14 = vector.multi_reduction <maximumf>, %13, %cst_12 [1] : vector<2x8x8xf32> to vector<2x8xf32>
    %15 = vector.shape_cast %14 : vector<2x8xf32> to vector<2x1x8xf32>
    %16 = vector.broadcast %15 : vector<2x1x8xf32> to vector<2x8x8xf32>
    %17 = arith.subf %13, %16 : vector<2x8x8xf32>
    %18 = math.exp %17 : vector<2x8x8xf32>
    %cst_13 = arith.constant dense<0.000000e+00> : vector<2x8xf32>
    %19 = vector.multi_reduction <add>, %18, %cst_13 [1] : vector<2x8x8xf32> to vector<2x8xf32>
    %20 = vector.shape_cast %19 : vector<2x8xf32> to vector<2x1x8xf32>
    %21 = tpu.reciprocal %20 {approx = true} : vector<2x1x8xf32> -> vector<2x1x8xf32>
    %22 = arith.mulf %20, %21 : vector<2x1x8xf32>
    %cst_14 = arith.constant 2.000000e+00 : f32
    %23 = vector.broadcast %cst_14 : f32 to vector<2x1x8xf32>
    %24 = arith.subf %23, %22 : vector<2x1x8xf32>
    %25 = arith.mulf %21, %24 : vector<2x1x8xf32>
    %26 = vector.broadcast %25 : vector<2x1x8xf32> to vector<2x8x8xf32>
    %27 = arith.mulf %18, %26 : vector<2x8x8xf32>
    %c0_15 = arith.constant 0 : index
    %c0_16 = arith.constant 0 : index
    %28 = vector.load %arg6[%c0_15, %c0_16] : memref<1x128xf32, #tpu.memory_space<vmem>>, vector<1x128xf32>
    %29 = vector.extract_strided_slice %27 {offsets = [0, 0, 0], sizes = [2, 8, 1], strides = [1, 1, 1]} : vector<2x8x8xf32> to vector<2x8x1xf32>
    %30 = vector.broadcast %29 : vector<2x8x1xf32> to vector<2x8x32xf32>
    %31 = arith.mulf %30, %0 : vector<2x8x32xf32>
    %cst_17 = arith.constant dense<0.000000e+00> : vector<2x32xf32>
    %32 = vector.multi_reduction <add>, %31, %cst_17 [1] : vector<2x8x32xf32> to vector<2x32xf32>
    %c0_18 = arith.constant 0 : index
    %c0_19 = arith.constant 0 : index
    %c0_20 = arith.constant 0 : index
    %33 = vector.load %arg5[%c0_18, %c0_19, %c0_20] : memref<2x32x128xf32, #tpu.memory_space<vmem>>, vector<1x32x128xf32>
    %34 = vector.shape_cast %33 : vector<1x32x128xf32> to vector<32x128xf32>
    %cst_21 = arith.constant dense<0.000000e+00> : vector<2x128xf32>
    %35 = tpu.matmul %32, %34, %cst_21 {dimension_numbers = #tpu.dot_dimension_numbers<[1], [0], [0], [1], [0, 0, 1, 1], [], []>} : vector<2x32xf32>, vector<32x128xf32>, vector<2x128xf32> -> vector<2x128xf32>
    %36 = vector.broadcast %28 : vector<1x128xf32> to vector<2x128xf32>
    %37 = arith.addf %36, %35 : vector<2x128xf32>
    %38 = vector.extract_strided_slice %27 {offsets = [0, 0, 1], sizes = [2, 8, 1], strides = [1, 1, 1]} : vector<2x8x8xf32> to vector<2x8x1xf32>
    %39 = vector.broadcast %38 : vector<2x8x1xf32> to vector<2x8x32xf32>
    %40 = arith.mulf %39, %0 : vector<2x8x32xf32>
    %cst_22 = arith.constant dense<0.000000e+00> : vector<2x32xf32>
    %41 = vector.multi_reduction <add>, %40, %cst_22 [1] : vector<2x8x32xf32> to vector<2x32xf32>
    %c1 = arith.constant 1 : index
    %c0_23 = arith.constant 0 : index
    %c0_24 = arith.constant 0 : index
    %42 = vector.load %arg5[%c1, %c0_23, %c0_24] : memref<2x32x128xf32, #tpu.memory_space<vmem>>, vector<1x32x128xf32>
    %43 = vector.shape_cast %42 : vector<1x32x128xf32> to vector<32x128xf32>
    %cst_25 = arith.constant dense<0.000000e+00> : vector<2x128xf32>
    %44 = tpu.matmul %41, %43, %cst_25 {dimension_numbers = #tpu.dot_dimension_numbers<[1], [0], [0], [1], [0, 0, 1, 1], [], []>} : vector<2x32xf32>, vector<32x128xf32>, vector<2x128xf32> -> vector<2x128xf32>
    %45 = arith.addf %37, %44 : vector<2x128xf32>
    %c0_26 = arith.constant 0 : index
    %c0_27 = arith.constant 0 : index
    %46 = vector.load %arg7[%c0_26, %c0_27] : memref<2x128xf32, #tpu.memory_space<vmem>>, vector<2x128xf32>
    tpu.vector_store %arg7[%c0_26, %c0_27], %45 {strides = array<i32>} : memref<2x128xf32, #tpu.memory_space<vmem>>, vector<2x128xf32>,
    return
  }
}

</mosaic_0001>

<llo_original>
// kernel: attflat.1
$region0: #{attflat.1}
  #allocation0 [shape = 'u32[]', space=smem, size = 0x4, offset = 0x4, fixed_abs, tag = 'smem constant byte address 0x4 - core index']
  #allocation1 [shape = 'u32[144,128]{1,0:T(1,128)}', space=vmem, size = 0x12000, scoped, tag = 'internal scratch']
  %s0 = inlined_call_operand.vmem [shape: f32[2,8,32], index: 0, kind: input, shape index: {}]
  %s1 = inlined_call_operand.vmem [shape: f32[16,8], index: 1, kind: input, shape index: {}]
  %s2 = inlined_call_operand.vmem [shape: f32[32,128], index: 2, kind: input, shape index: {}]
  %s3 = inlined_call_operand.vmem [shape: f32[1,128], index: 3, kind: input, shape index: {}]
  %s4 = inlined_call_operand.vmem [shape: f32[128,8], index: 4, kind: input, shape index: {}]
  %s5 = inlined_call_operand.vmem [shape: f32[2,32,128], index: 5, kind: input, shape index: {}]
  %s6 = inlined_call_operand.vmem [shape: f32[1,128], index: 6, kind: input, shape index: {}]
  %s7 = inlined_call_operand.hbm [shape: f32[2,128], index: 7, kind: output, shape index: {}]
  %s8 = sld [smem:[#allocation0]]
  $region38: #{attflat.1} parent=0
    _
  %s10 = ssub.s32 1, %s8
  %s11 = scalar_select 0, %s10, %s8
  $region1: #{attflat.1} parent=0
    #allocation2 [shape = 'u8[1024]{0}', space=vmem, size = 0x400, scoped, tag = 'output window, operand 0, single buffered']
    #allocation3 [shape = 's32[1]{0}', space=sflag, size = 0x4, scoped, tag = 'scoped memory for attflat.1']
    %12 = vsyncpa [#allocation3], 0
    // Predicated region
    $region2: #{attflat.1} parent=1 // pred_check
      _
    $region3: #{attflat.1} parent=1 // pred_check_branch
      %14 = sbr.rel (0) target = $region5
    $region4: #{attflat.1} parent=1 // pred_region
      _
    $region5: #{attflat.1} parent=1 // pred_fallthru
      _
    // Predicated region
    $region6: #{attflat.1} parent=1 // pred_check
      _
    $region7: #{attflat.1} parent=1 // pred_check_branch
      %16 = sbr.rel (0) target = $region9
    $region8: #{attflat.1} parent=1 // pred_region
      _
    $region9: #{attflat.1} parent=1 // pred_fallthru
      _
    // Predicated region
    $region10: #{attflat.1} parent=1 // pred_check
      _
    $region11: #{attflat.1} parent=1 // pred_check_branch
      %18 = sbr.rel (0) target = $region13
    $region12: #{attflat.1} parent=1 // pred_region
      _
    $region13: #{attflat.1} parent=1 // pred_fallthru
      _
    // Predicated region
    $region14: #{attflat.1} parent=1 // pred_check
      _
    $region15: #{attflat.1} parent=1 // pred_check_branch
      %20 = sbr.rel (0) target = $region17
    $region16: #{attflat.1} parent=1 // pred_region
      _
    $region17: #{attflat.1} parent=1 // pred_fallthru
      _
    // Predicated region
    $region18: #{attflat.1} parent=1 // pred_check
      _
    $region19: #{attflat.1} parent=1 // pred_check_branch
      %22 = sbr.rel (0) target = $region21
    $region20: #{attflat.1} parent=1 // pred_region
      _
    $region21: #{attflat.1} parent=1 // pred_fallthru
      _
    // Predicated region
    $region22: #{attflat.1} parent=1 // pred_check
      _
    $region23: #{attflat.1} parent=1 // pred_check_branch
      %24 = sbr.rel (0) target = $region25
    $region24: #{attflat.1} parent=1 // pred_region
      _
    $region25: #{attflat.1} parent=1 // pred_fallthru
      _
    // Predicated region
    $region26: #{attflat.1} parent=1 // pred_check
      _
    $region27: #{attflat.1} parent=1 // pred_check_branch
      %26 = sbr.rel (0) target = $region29
    $region28: #{attflat.1} parent=1 // pred_region
      _
    $region29: #{attflat.1} parent=1 // pred_fallthru
      _
    %v27 = vld [vmem:[%s0] sm:$0xff]
    %v28 = vld [vmem:[%s0 + $0x8] sm:$0xff]
    %v29 = vld [vmem:[%s2] sm:$0xff]
    %v30 = vld [vmem:[%s2 + $0x8] sm:$0xff]
    %v31 = vld [vmem:[%s2 + $0x10] sm:$0xff]
    %v32 = vld [vmem:[%s2 + $0x18] sm:$0xff]
    %v33 = vld [vmem:[%s3] sm:$0x1]
    %v35 = vlaneseq
    %v36 = vshrl.u32 %v35, 7
    %v37 = vsub.s32 0, %v36
    %v38 = vrot.slane %v33, %v37
    %vm40 = vcmask 261120
    %v42 = vsel %vm40, %v27, 0
    %v45 = vsel %vm40, %v28, 0
    %47 = vmatprep.subr.mxu0 0.0
    %48 = vmatpush1.msra.mxu0 %v29
    %49 = vmatprep.subr.mxu0 0.0
    %50 = vmatpush1.msra.mxu0 %v30
    %51 = vmatprep.subr.mxu0 0.0
    %52 = vmatpush1.msra.mxu0 %v31
    %53 = vmatprep.subr.mxu0 0.0
    %54 = vmatpush1.msra.mxu0 %v32
    %55 = vmatprep.subr.mxu0 0.0
    %56 = vmatpush1.msra.mxu0 0.0
    %57 = vmatprep.subr.mxu0 0.0
    %58 = vmatpush1.msra.mxu0 0.0
    %59 = vmatprep.subr.mxu0 0.0
    %60 = vmatpush1.msra.mxu0 0.0
    %61 = vmatprep.subr.mxu0 0.0
    %62 = vmatpush1.msra.mxu0 0.0
    %63 = vmatprep.subr.mxu0 0.0
    %64 = vmatpush1.msra.mxu0 0.0
    %65 = vmatprep.subr.mxu0 0.0
    %66 = vmatpush1.msra.mxu0 0.0
    %67 = vmatprep.subr.mxu0 0.0
    %68 = vmatpush1.msra.mxu0 0.0
    %69 = vmatprep.subr.mxu0 0.0
    %70 = vmatpush1.msra.mxu0 0.0
    %71 = vmatprep.subr.mxu0 0.0
    %72 = vmatpush1.msra.mxu0 0.0
    %73 = vmatprep.subr.mxu0 0.0
    %74 = vmatpush1.msra.mxu0 0.0
    %75 = vmatprep.subr.mxu0 0.0
    %76 = vmatpush1.msra.mxu0 0.0
    %77 = vmatprep.subr.mxu0 0.0
    %78 = vmatpush1.msra.mxu0 0.0
    %79 = vmatprep.subr.mxu0 0.0
    %80 = vmatpush1.msra.mxu0 0.0
    %81 = vmatprep.subr.mxu0 0.0
    %82 = vmatpush1.msra.mxu0 0.0
    %83 = vmatprep.subr.mxu0 0.0
    %84 = vmatpush1.msra.mxu0 0.0
    %85 = vmatprep.subr.mxu0 0.0
    %86 = vmatpush1.msra.mxu0 0.0
    %87 = vmatprep.subr.mxu0 0.0
    %88 = vmatpush1.msra.mxu0 0.0
    %89 = vmatprep.subr.mxu0 0.0
    %90 = vmatpush1.msra.mxu0 0.0
    %91 = vmatprep.subr.mxu0 0.0
    %92 = vmatpush1.msra.mxu0 0.0
    %93 = vmatprep.subr.mxu0 0.0
    %94 = vmatpush1.msra.mxu0 0.0
    %95 = vmatprep.subr.mxu0 0.0
    %96 = vmatpush1.msra.mxu0 0.0
    %97 = vmatprep.subr.mxu0 0.0
    %98 = vmatpush1.msra.mxu0 0.0
    %99 = vmatprep.subr.mxu0 0.0
    %100 = vmatpush1.msra.mxu0 0.0
    %101 = vmatprep.subr.mxu0 0.0
    %102 = vmatpush1.msra.mxu0 0.0
    %103 = vmatprep.subr.mxu0 0.0
    %104 = vmatpush1.msra.mxu0 0.0
    %105 = vmatprep.subr.mxu0 0.0
    %106 = vmatpush1.msra.mxu0 0.0
    %107 = vmatprep.subr.mxu0 0.0
    %108 = vmatpush1.msra.mxu0 0.0
    %109 = vmatprep.subr.mxu0 0.0
    %110 = vmatpush1.msra.mxu0 0.0
    %111 = vmatprep.mubr.f32.mxu0 0.0
    %112 = vmatmul.mubr.f32.gmra.mrb[0].mxu0 %v42
    %v113 = vpop.f32.mrb[0].mxu0
    %v114 = vadd.f32 %v38, %v113
    %v115 = vpop.f32.mrb[0].mxu0
    %116 = vmatprep.mubr.f32.mxu0 0.0
    %117 = vmatmul.mubr.f32.gmra.mrb[0].mxu0 %v45
    %v118 = vpop.f32.mrb[0].mxu0
    %v119 = vadd.f32 %v38, %v118
    %v120 = vpop.f32.mrb[0].mxu0
    %121 = vdwg.mxu0
    %v122 = vmax.f32 %v114, 0.0
    %v123 = vmax.f32 %v119, 0.0
    %v124 = vld [vmem:[%s4] sm:$0xff]
    %v125 = vld [vmem:[%s4 + $0x8] sm:$0xff]
    %v126 = vld [vmem:[%s4 + $0x10] sm:$0xff]
    %v127 = vld [vmem:[%s4 + $0x18] sm:$0xff]
    %v128 = vld [vmem:[%s4 + $0x20] sm:$0xff]
    %v129 = vld [vmem:[%s4 + $0x28] sm:$0xff]
    %v130 = vld [vmem:[%s4 + $0x30] sm:$0xff]
    %v131 = vld [vmem:[%s4 + $0x38] sm:$0xff]
    %v132 = vld [vmem:[%s4 + $0x40] sm:$0xff]
    %v133 = vld [vmem:[%s4 + $0x48] sm:$0xff]
    %v134 = vld [vmem:[%s4 + $0x50] sm:$0xff]
    %v135 = vld [vmem:[%s4 + $0x58] sm:$0xff]
    %v136 = vld [vmem:[%s4 + $0x60] sm:$0xff]
    %v137 = vld [vmem:[%s4 + $0x68] sm:$0xff]
    %v138 = vld [vmem:[%s4 + $0x70] sm:$0xff]
    %v139 = vld [vmem:[%s4 + $0x78] sm:$0xff]
    %v140 = vld [vmem:[%s1] sm:$0xff]
    %v141 = vld [vmem:[%s1 + $0x8] sm:$0xff]
    %142 = vmatprep.subr.mxu0 0.0
    %143 = vmatpush1.msra.mxu0 %v124
    %144 = vmatprep.subr.mxu0 0.0
    %145 = vmatpush1.msra.mxu0 %v125
    %146 = vmatprep.subr.mxu0 0.0
    %147 = vmatpush1.msra.mxu0 %v126
    %148 = vmatprep.subr.mxu0 0.0
    %149 = vmatpush1.msra.mxu0 %v127
    %150 = vmatprep.subr.mxu0 0.0
    %151 = vmatpush1.msra.mxu0 %v128
    %152 = vmatprep.subr.mxu0 0.0
    %153 = vmatpush1.msra.mxu0 %v129
    %154 = vmatprep.subr.mxu0 0.0
    %155 = vmatpush1.msra.mxu0 %v130
    %156 = vmatprep.subr.mxu0 0.0
    %157 = vmatpush1.msra.mxu0 %v131
    %158 = vmatprep.subr.mxu0 0.0
    %159 = vmatpush1.msra.mxu0 %v132
    %160 = vmatprep.subr.mxu0 0.0
    %161 = vmatpush1.msra.mxu0 %v133
    %162 = vmatprep.subr.mxu0 0.0
    %163 = vmatpush1.msra.mxu0 %v134
    %164 = vmatprep.subr.mxu0 0.0
    %165 = vmatpush1.msra.mxu0 %v135
    %166 = vmatprep.subr.mxu0 0.0
    %167 = vmatpush1.msra.mxu0 %v136
    %168 = vmatprep.subr.mxu0 0.0
    %169 = vmatpush1.msra.mxu0 %v137
    %170 = vmatprep.subr.mxu0 0.0
    %171 = vmatpush1.msra.mxu0 %v138
    %172 = vmatprep.subr.mxu0 0.0
    %173 = vmatpush1.msra.mxu0 %v139
    %174 = vmatprep.subr.mxu0 0.0
    %175 = vmatpush1.msra.mxu0 0.0
    %176 = vmatprep.subr.mxu0 0.0
    %177 = vmatpush1.msra.mxu0 0.0
    %178 = vmatprep.subr.mxu0 0.0
    %179 = vmatpush1.msra.mxu0 0.0
    %180 = vmatprep.subr.mxu0 0.0
    %181 = vmatpush1.msra.mxu0 0.0
    %182 = vmatprep.subr.mxu0 0.0
    %183 = vmatpush1.msra.mxu0 0.0
    %184 = vmatprep.subr.mxu0 0.0
    %185 = vmatpush1.msra.mxu0 0.0
    %186 = vmatprep.subr.mxu0 0.0
    %187 = vmatpush1.msra.mxu0 0.0
    %188 = vmatprep.subr.mxu0 0.0
    %189 = vmatpush1.msra.mxu0 0.0
    %190 = vmatprep.subr.mxu0 0.0
    %191 = vmatpush1.msra.mxu0 0.0
    %192 = vmatprep.subr.mxu0 0.0
    %193 = vmatpush1.msra.mxu0 0.0
    %194 = vmatprep.subr.mxu0 0.0
    %195 = vmatpush1.msra.mxu0 0.0
    %196 = vmatprep.subr.mxu0 0.0
    %197 = vmatpush1.msra.mxu0 0.0
    %198 = vmatprep.subr.mxu0 0.0
    %199 = vmatpush1.msra.mxu0 0.0
    %200 = vmatprep.subr.mxu0 0.0
    %201 = vmatpush1.msra.mxu0 0.0
    %202 = vmatprep.subr.mxu0 0.0
    %203 = vmatpush1.msra.mxu0 0.0
    %204 = vmatprep.subr.mxu0 0.0
    %205 = vmatpush1.msra.mxu0 0.0
    %206 = vmatprep.mubr.f32.mxu0 0.0
    %207 = vmatmul.mubr.f32.gmra.mrb[0].mxu0 %v122
    %v208 = vpop.f32.mrb[0].mxu0
    %v209 = vadd.f32 %v140, %v208
    %v210 = vpop.f32.mrb[0].mxu0
    %211 = vmatprep.mubr.f32.mxu0 0.0
    %212 = vmatmul.mubr.f32.gmra.mrb[0].mxu0 %v123
    %v213 = vpop.f32.mrb[0].mxu0
    %v214 = vadd.f32 %v141, %v213
    %v215 = vpop.f32.mrb[0].mxu0
    %216 = vdwg.mxu0
    %vm217 = vcmask 64512
    %v218 = vsel %vm217, %v209, -inf
    %v219 = vrot.slane %v218, 4
    %v220 = vmax.f32 %v218, %v219
    %v221 = vrot.slane %v220, 2
    %v222 = vmax.f32 %v220, %v221
    %v223 = vrot.slane %v222, 1
    %v224 = vmax.f32 %v222, %v223
    %v225 = vsel %vm217, %v214, -inf
    %v226 = vrot.slane %v225, 4
    %v227 = vmax.f32 %v225, %v226
    %v228 = vrot.slane %v227, 2
    %v229 = vmax.f32 %v227, %v228
    %v230 = vrot.slane %v229, 1
    %v231 = vmax.f32 %v229, %v230
    %v232 = vsub.f32 %v209, %v224
    %v233 = vsub.f32 %v214, %v231
    %v234 = vmul.f32 %v232, 1.442695
    %v235 = vpow.pop %v234
    %v236 = vmul.f32 %v233, 1.442695
    %v237 = vpow.pop %v236
    %v238 = vsel %vm217, %v235, 0.0
    %v239 = vrot.slane %v238, 4
    %v240 = vadd.f32 %v238, %v239
    %v241 = vrot.slane %v240, 2
    %v242 = vadd.f32 %v240, %v241
    %v243 = vrot.slane %v242, 1
    %v244 = vadd.f32 %v242, %v243
    %v245 = vsel %vm217, %v237, 0.0
    %v246 = vrot.slane %v245, 4
    %v247 = vadd.f32 %v245, %v246
    %v248 = vrot.slane %v247, 2
    %v249 = vadd.f32 %v247, %v248
    %v250 = vrot.slane %v249, 1
    %v251 = vadd.f32 %v249, %v250
    %v252 = vrcp.pop %v244
    %v253 = vrcp.pop %v251
    %v254 = vmul.f32 %v244, %v252
    %v255 = vmul.f32 %v251, %v253
    %v256 = vsub.f32 2.0, %v254
    %v257 = vsub.f32 2.0, %v255
    %v258 = vmul.f32 %v252, %v256
    %v259 = vmul.f32 %v253, %v257
    %v260 = vmul.f32 %v235, %v258
    %v261 = vmul.f32 %v237, %v259
    %v262 = vld [vmem:[%s6] sm:$0x1]
    %264 = vset.pattern.permute.xlu0 0
    %265 = vperm.xlu0 %264, %v260
    %v266 = vpop.permute.xlu0 %265
    %269 = vset.pattern.permute.xlu0 0
    %270 = vperm.xlu0 %269, %v261
    %v271 = vpop.permute.xlu0 %270
    %v273 = vmul.f32 %v266, %v27
    %v274 = vmul.f32 %v271, %v28
    %v275 = vsel %vm40, %v273, 0.0
    %v276 = vrot.slane %v275, 4
    %v277 = vadd.f32 %v275, %v276
    %v278 = vrot.slane %v277, 2
    %v279 = vadd.f32 %v277, %v278
    %v280 = vrot.slane %v279, 1
    %v281 = vadd.f32 %v279, %v280
    %v282 = vsel %vm40, %v274, 0.0
    %v283 = vrot.slane %v282, 4
    %v284 = vadd.f32 %v282, %v283
    %v285 = vrot.slane %v284, 2
    %v286 = vadd.f32 %v284, %v285
    %v287 = vrot.slane %v286, 1
    %v288 = vadd.f32 %v286, %v287
    %v289 = vld [vmem:[%s5] sm:$0xff]
    %v290 = vld [vmem:[%s5 + $0x8] sm:$0xff]
    %v291 = vld [vmem:[%s5 + $0x10] sm:$0xff]
    %v292 = vld [vmem:[%s5 + $0x18] sm:$0xff]
    %vm295 = vcmask 1041409
    %v296 = vsel %vm295, %v288, %v281
    %v297 = vsel %vm40, %v296, 0
    %299 = vmatprep.subr.mxu0 0.0
    %300 = vmatpush1.msra.mxu0 %v289
    %301 = vmatprep.subr.mxu0 0.0
    %302 = vmatpush1.msra.mxu0 %v290
    %303 = vmatprep.subr.mxu0 0.0
    %304 = vmatpush1.msra.mxu0 %v291
    %305 = vmatprep.subr.mxu0 0.0
    %306 = vmatpush1.msra.mxu0 %v292
    %307 = vmatprep.subr.mxu0 0.0
    %308 = vmatpush1.msra.mxu0 0.0
    %309 = vmatprep.subr.mxu0 0.0
    %310 = vmatpush1.msra.mxu0 0.0
    %311 = vmatprep.subr.mxu0 0.0
    %312 = vmatpush1.msra.mxu0 0.0
    %313 = vmatprep.subr.mxu0 0.0
    %314 = vmatpush1.msra.mxu0 0.0
    %315 = vmatprep.subr.mxu0 0.0
    %316 = vmatpush1.msra.mxu0 0.0
    %317 = vmatprep.subr.mxu0 0.0
    %318 = vmatpush1.msra.mxu0 0.0
    %319 = vmatprep.subr.mxu0 0.0
    %320 = vmatpush1.msra.mxu0 0.0
    %321 = vmatprep.subr.mxu0 0.0
    %322 = vmatpush1.msra.mxu0 0.0
    %323 = vmatprep.subr.mxu0 0.0
    %324 = vmatpush1.msra.mxu0 0.0
    %325 = vmatprep.subr.mxu0 0.0
    %326 = vmatpush1.msra.mxu0 0.0
    %327 = vmatprep.subr.mxu0 0.0
    %328 = vmatpush1.msra.mxu0 0.0
    %329 = vmatprep.subr.mxu0 0.0
    %330 = vmatpush1.msra.mxu0 0.0
    %331 = vmatprep.subr.mxu0 0.0
    %332 = vmatpush1.msra.mxu0 0.0
    %333 = vmatprep.subr.mxu0 0.0
    %334 = vmatpush1.msra.mxu0 0.0
    %335 = vmatprep.subr.mxu0 0.0
    %336 = vmatpush1.msra.mxu0 0.0
    %337 = vmatprep.subr.mxu0 0.0
    %338 = vmatpush1.msra.mxu0 0.0
    %339 = vmatprep.subr.mxu0 0.0
    %340 = vmatpush1.msra.mxu0 0.0
    %341 = vmatprep.subr.mxu0 0.0
    %342 = vmatpush1.msra.mxu0 0.0
    %343 = vmatprep.subr.mxu0 0.0
    %344 = vmatpush1.msra.mxu0 0.0
    %345 = vmatprep.subr.mxu0 0.0
    %346 = vmatpush1.msra.mxu0 0.0
    %347 = vmatprep.subr.mxu0 0.0
    %348 = vmatpush1.msra.mxu0 0.0
    %349 = vmatprep.subr.mxu0 0.0
    %350 = vmatpush1.msra.mxu0 0.0
    %351 = vmatprep.subr.mxu0 0.0
    %352 = vmatpush1.msra.mxu0 0.0
    %353 = vmatprep.subr.mxu0 0.0
    %354 = vmatpush1.msra.mxu0 0.0
    %355 = vmatprep.subr.mxu0 0.0
    %356 = vmatpush1.msra.mxu0 0.0
    %357 = vmatprep.subr.mxu0 0.0
    %358 = vmatpush1.msra.mxu0 0.0
    %359 = vmatprep.subr.mxu0 0.0
    %360 = vmatpush1.msra.mxu0 0.0
    %361 = vmatprep.subr.mxu0 0.0
    %362 = vmatpush1.msra.mxu0 0.0
    %363 = vmatprep.mubr.f32.mxu0 0.0
    %364 = vmatmul.mubr.f32.gmra.mrb[0].mxu0 %v297
    %v365 = vpop.f32.mrb[0].mxu0
    %v366 = vadd.f32 0.0, %v365
    %v367 = vpop.f32.mrb[0].mxu0
    %368 = vdwg.mxu0
    %v370 = vlaneseq
    %v371 = vshrl.u32 %v370, 7
    %v372 = vsub.s32 0, %v371
    %v373 = vrot.slane %v262, %v372
    %v375 = vadd.f32 %v373, %v366
    %376 = vset.pattern.permute.xlu0 1
    %377 = vperm.xlu0 %376, %v260
    %v378 = vpop.permute.xlu0 %377
    %380 = vset.pattern.permute.xlu0 1
    %381 = vperm.xlu0 %380, %v261
    %v382 = vpop.permute.xlu0 %381
    %v384 = vmul.f32 %v378, %v27
    %v385 = vmul.f32 %v382, %v28
    %v386 = vsel %vm40, %v384, 0.0
    %v387 = vrot.slane %v386, 4
    %v388 = vadd.f32 %v386, %v387
    %v389 = vrot.slane %v388, 2
    %v390 = vadd.f32 %v388, %v389
    %v391 = vrot.slane %v390, 1
    %v392 = vadd.f32 %v390, %v391
    %v393 = vsel %vm40, %v385, 0.0
    %v394 = vrot.slane %v393, 4
    %v395 = vadd.f32 %v393, %v394
    %v396 = vrot.slane %v395, 2
    %v397 = vadd.f32 %v395, %v396
    %v398 = vrot.slane %v397, 1
    %v399 = vadd.f32 %v397, %v398
    %s400 = scalar_lea.vmem %s5, 32
    %v401 = vld [vmem:[%s400] sm:$0xff]
    %v402 = vld [vmem:[%s400 + $0x8] sm:$0xff]
    %v403 = vld [vmem:[%s400 + $0x10] sm:$0xff]
    %v404 = vld [vmem:[%s400 + $0x18] sm:$0xff]
    %v407 = vsel %vm295, %v399, %v392
    %v408 = vsel %vm40, %v407, 0
    %410 = vmatprep.subr.mxu0 0.0
    %411 = vmatpush1.msra.mxu0 %v401
    %412 = vmatprep.subr.mxu0 0.0
    %413 = vmatpush1.msra.mxu0 %v402
    %414 = vmatprep.subr.mxu0 0.0
    %415 = vmatpush1.msra.mxu0 %v403
    %416 = vmatprep.subr.mxu0 0.0
    %417 = vmatpush1.msra.mxu0 %v404
    %418 = vmatprep.subr.mxu0 0.0
    %419 = vmatpush1.msra.mxu0 0.0
    %420 = vmatprep.subr.mxu0 0.0
    %421 = vmatpush1.msra.mxu0 0.0
    %422 = vmatprep.subr.mxu0 0.0
    %423 = vmatpush1.msra.mxu0 0.0
    %424 = vmatprep.subr.mxu0 0.0
    %425 = vmatpush1.msra.mxu0 0.0
    %426 = vmatprep.subr.mxu0 0.0
    %427 = vmatpush1.msra.mxu0 0.0
    %428 = vmatprep.subr.mxu0 0.0
    %429 = vmatpush1.msra.mxu0 0.0
    %430 = vmatprep.subr.mxu0 0.0
    %431 = vmatpush1.msra.mxu0 0.0
    %432 = vmatprep.subr.mxu0 0.0
    %433 = vmatpush1.msra.mxu0 0.0
    %434 = vmatprep.subr.mxu0 0.0
    %435 = vmatpush1.msra.mxu0 0.0
    %436 = vmatprep.subr.mxu0 0.0
    %437 = vmatpush1.msra.mxu0 0.0
    %438 = vmatprep.subr.mxu0 0.0
    %439 = vmatpush1.msra.mxu0 0.0
    %440 = vmatprep.subr.mxu0 0.0
    %441 = vmatpush1.msra.mxu0 0.0
    %442 = vmatprep.subr.mxu0 0.0
    %443 = vmatpush1.msra.mxu0 0.0
    %444 = vmatprep.subr.mxu0 0.0
    %445 = vmatpush1.msra.mxu0 0.0
    %446 = vmatprep.subr.mxu0 0.0
    %447 = vmatpush1.msra.mxu0 0.0
    %448 = vmatprep.subr.mxu0 0.0
    %449 = vmatpush1.msra.mxu0 0.0
    %450 = vmatprep.subr.mxu0 0.0
    %451 = vmatpush1.msra.mxu0 0.0
    %452 = vmatprep.subr.mxu0 0.0
    %453 = vmatpush1.msra.mxu0 0.0
    %454 = vmatprep.subr.mxu0 0.0
    %455 = vmatpush1.msra.mxu0 0.0
    %456 = vmatprep.subr.mxu0 0.0
    %457 = vmatpush1.msra.mxu0 0.0
    %458 = vmatprep.subr.mxu0 0.0
    %459 = vmatpush1.msra.mxu0 0.0
    %460 = vmatprep.subr.mxu0 0.0
    %461 = vmatpush1.msra.mxu0 0.0
    %462 = vmatprep.subr.mxu0 0.0
    %463 = vmatpush1.msra.mxu0 0.0
    %464 = vmatprep.subr.mxu0 0.0
    %465 = vmatpush1.msra.mxu0 0.0
    %466 = vmatprep.subr.mxu0 0.0
    %467 = vmatpush1.msra.mxu0 0.0
    %468 = vmatprep.subr.mxu0 0.0
    %469 = vmatpush1.msra.mxu0 0.0
    %470 = vmatprep.subr.mxu0 0.0
    %471 = vmatpush1.msra.mxu0 0.0
    %472 = vmatprep.subr.mxu0 0.0
    %473 = vmatpush1.msra.mxu0 0.0
    %474 = vmatprep.mubr.f32.mxu0 0.0
    %475 = vmatmul.mubr.f32.gmra.mrb[0].mxu0 %v408
    %v476 = vpop.f32.mrb[0].mxu0
    %v477 = vadd.f32 0.0, %v476
    %v478 = vpop.f32.mrb[0].mxu0
    %479 = vdwg.mxu0
    %v480 = vadd.f32 %v375, %v477
    %481 = vst [vmem:[#allocation2] sm:$0x3] %v480
    // Predicated region
    $region30: #{attflat.1} parent=1 // pred_check
      _
    $region31: #{attflat.1} parent=1 // pred_check_branch
      %483 = sbr.rel (0) target = $region33
    $region32: #{attflat.1} parent=1 // pred_region
      %s485 = ssub.s32 32, 32
      %486 = vsyncadd [#allocation3], %s485
      %s488 = sshll.u32 [#allocation2], 4
      %s489 = int_to_ptr.vmem [resolvable:$true] %s488
      %491 = dma.vmem_to_hbm [thread:$0]  %s489, 32, %s7, [#allocation3]
    $region33: #{attflat.1} parent=1 // pred_fallthru
      _
    // Predicated region
    $region34: #{attflat.1} parent=1 // pred_check
      _
    $region35: #{attflat.1} parent=1 // pred_check_branch
      %493 = sbr.rel (0) target = $region37
    $region36: #{attflat.1} parent=1 // pred_region
      %494 = dma.done [#allocation3], 32
    $region37: #{attflat.1} parent=1 // pred_fallthru
      _
    %495 = vsyncpa [#allocation3], 1

</llo_original>
